<compile_context>
chip_gen: v6e
topology: v6e:2x2x1
jax: 0.10.0
libtpu: 0.0.40
codegen_flags: <defaults>
</compile_context>

<pallas_src>
from functools import partial

import numpy as np
import jax
import jax.numpy as jnp
from jax.experimental import pallas as pl
from jax.experimental.pallas import tpu as pltpu


_TILE_N = 16      # point-loss rows per grid step (bf16-friendly sublane multiple)

# Output lane packing (row 0 of each (8, 128) block):
#   lane 0: loss_ce   lane 1: loss_disappear   lane 2: loss_mask partial
#   lane 3: loss_dice partial   lane 4: loss_bce   lane 5: loss_sim   lanes 6..127: 0


def _round_up(n, m):
    n = max(int(n), 1)
    return ((n + m - 1) // m) * m


# ------------------------------------------------------------------------------------------------
# Fused Pallas kernel
# ------------------------------------------------------------------------------------------------

def _fused_losses_kernel(ce_logits_ref,   # (C+1, Mce)  f32  classes on sublanes
                         ce_labels_ref,   # (1,   Mce)  i32
                         ce_f_ref,        # (2,   Mce)  f32  [weight, segment(1=disappear row)]
                         val_f_ref,       # (3,   Mq)   f32  [logits, labels, weight(=1/Mq | 0)]
                         pt_logits_ref,   # (TILE_N, P) bf16
                         pt_labels_ref,   # (TILE_N, P) bf16
                         pt_roww_ref,     # (TILE_N, 1) f32  per-row weight (= 1/num_masks | 0)
                         sim_leftT_ref,   # (D, ML)     f32  pre-transposed left embeds
                         sim_right_ref,   # (R, D)      f32
                         sim_i_ref,       # (3, ML)     i32  [label, col_start, col_end]
                         sim_f_ref,       # (2, ML)     f32  [weight (mean folded), clamped scale]
                         out_ref):        # (8, 128)    f32
    f32 = jnp.float32
    inv_p = 1.0 / pt_logits_ref.shape[1]

    # ---------------- point losses (every grid step; dominant compute at prod num_points) ------
    x = pt_logits_ref[...].astype(f32)
    t = pt_labels_ref[...].astype(f32)
    roww = pt_roww_ref[...].astype(f32)                           # (TILE_N, 1)
    e = jnp.exp(-jnp.abs(x))                                      # shared EUP exp
    bce = jnp.maximum(x, 0.0) - x * t + jnp.log1p(e)
    col = jnp.sum(bce * roww, axis=0, keepdims=True)              # rows first (VPU adds)
    pm = jnp.sum(col, axis=1, keepdims=True) * inv_p              # (1, 1) loss_mask partial
    r = pl.reciprocal(1.0 + e, approx=True)
    sig = jnp.where(x >= 0.0, r, e * r)                           # sigmoid from the shared exp
    num = 2.0 * jnp.sum(sig * t, axis=1, keepdims=True)
    den = jnp.sum(sig + t, axis=1, keepdims=True)
    dice = 1.0 - (num + 1.0) / (den + 1.0)                        # (TILE_N, 1)
    pd = jnp.sum(dice * roww, axis=0, keepdims=True)              # (1, 1) loss_dice partial

    def pack(l0, l1, l4, l5):
        row = jax.lax.broadcasted_iota(jnp.int32, (8, 128), 0)
        lane = jax.lax.broadcasted_iota(jnp.int32, (8, 128), 1)
        first = row == 0
        full = lambda v: jnp.broadcast_to(v, (8, 128))
        out = jnp.where(first & (lane == 0), full(l0), 0.0)
        out = out + jnp.where(first & (lane == 1), full(l1), 0.0)
        out = out + jnp.where(first & (lane == 2), full(pm), 0.0)
        out = out + jnp.where(first & (lane == 3), full(pd), 0.0)
        out = out + jnp.where(first & (lane == 4), full(l4), 0.0)
        out = out + jnp.where(first & (lane == 5), full(l5), 0.0)
        return out.astype(out_ref.dtype)

    @pl.when(pl.program_id(0) == 0)
    def _():
        # ---------------- loss_ce + loss_disappear: fused weighted softmax-CE ------------------
        logits = ce_logits_ref[...].astype(f32)                   # (C+1, Mce)
        labels = ce_labels_ref[...]
        w = ce_f_ref[0:1, :].astype(f32)
        seg = ce_f_ref[1:2, :].astype(f32)
        m = jnp.max(logits, axis=0, keepdims=True)
        z = logits - m
        lse = jnp.log(jnp.sum(jnp.exp(z), axis=0, keepdims=True))
        cls_iota = jax.lax.broadcasted_iota(jnp.int32, logits.shape, 0)
        tgt = jnp.sum(jnp.where(cls_iota == labels, z, 0.0), axis=0, keepdims=True)
        row_ce = lse - tgt                                        # (1, Mce)
        w_lab = w * (1.0 - seg)
        w_dis = w * seg
        loss_ce = (jnp.sum(row_ce * w_lab, axis=1, keepdims=True)
                   / jnp.maximum(jnp.sum(w_lab, axis=1, keepdims=True), 1e-12))
        loss_dis = (jnp.sum(row_ce * w_dis, axis=1, keepdims=True)
                    / jnp.maximum(jnp.sum(w_dis, axis=1, keepdims=True), 1e-12))

        # ---------------- loss_bce (pred_valid); 1/Mq folded into the weight row ---------------
        vx = val_f_ref[0:1, :].astype(f32)
        vt = val_f_ref[1:2, :].astype(f32)
        vw = val_f_ref[2:3, :].astype(f32)
        vbce = jnp.maximum(vx, 0.0) - vx * vt + jnp.log1p(jnp.exp(-jnp.abs(vx)))
        loss_bce = jnp.sum(vbce * vw, axis=1, keepdims=True)

        # ---------------- loss_sim: all frames in one block-masked MXU matmul ------------------
        lftT = sim_leftT_ref[...].astype(f32)                     # (D, ML)
        rgt = sim_right_ref[...].astype(f32)                      # (R, D)
        eps2 = 1e-24                                              # == F.normalize eps**2
        lft_n = lftT * jax.lax.rsqrt(
            jnp.maximum(jnp.sum(lftT * lftT, axis=0, keepdims=True), eps2))
        rgt_n = rgt * jax.lax.rsqrt(
            jnp.maximum(jnp.sum(rgt * rgt, axis=1, keepdims=True), eps2))
        sim = jax.lax.dot_general(rgt_n, lft_n, (((1,), (0,)), ((), ())),
                                  preferred_element_type=f32)     # (R, ML) canonical MXU shape
        sim = sim * sim_f_ref[1:2, :].astype(f32)                 # scale pre-clamped outside
        slab = sim_i_ref[0:1, :]
        scs = sim_i_ref[1:2, :]
        scend = sim_i_ref[2:3, :]
        r_iota = jax.lax.broadcasted_iota(jnp.int32, sim.shape, 0)
        cvalid = (r_iota >= scs) & (r_iota < scend)               # per-column class-block mask
        sim_m = jnp.where(cvalid, sim, -1e30)
        m2 = jnp.max(sim_m, axis=0, keepdims=True)
        z2 = sim_m - m2
        e2 = jnp.where(cvalid, jnp.exp(z2), 0.0)
        lse2 = jnp.log(jnp.sum(e2, axis=0, keepdims=True))
        tgt2 = jnp.sum(jnp.where(r_iota == slab, z2, 0.0), axis=0, keepdims=True)
        loss_sim = jnp.sum((lse2 - tgt2) * sim_f_ref[0:1, :].astype(f32),
                           axis=1, keepdims=True)

        out_ref[...] = pack(loss_ce, loss_dis, loss_bce, loss_sim)

    @pl.when(pl.program_id(0) != 0)
    def _():
        zero = jnp.zeros((1, 1), f32)
        out_ref[...] = pack(zero, zero, zero, zero)


def fused_losses_call(ce_logits, ce_labels, ce_f, val_f,
                      pt_logits, pt_labels, pt_roww,
                      sim_leftT, sim_right, sim_i, sim_f):
    tile_n = _TILE_N
    n_pad, p = pt_logits.shape
    g = n_pad // tile_n
    c1, mce = ce_logits.shape
    mq = val_f.shape[1]
    d_embed, ml = sim_leftT.shape
    r_dim = sim_right.shape[0]

    const2 = lambda i: (0, 0)
    in_specs = [
        pl.BlockSpec((c1, mce), const2),
        pl.BlockSpec((1, mce), const2),
        pl.BlockSpec((2, mce), const2),
        pl.BlockSpec((3, mq), const2),
        pl.BlockSpec((tile_n, p), lambda i: (i, 0)),
        pl.BlockSpec((tile_n, p), lambda i: (i, 0)),
        pl.BlockSpec((tile_n, 1), lambda i: (i, 0)),
        pl.BlockSpec((d_embed, ml), const2),
        pl.BlockSpec((r_dim, d_embed), const2),
        pl.BlockSpec((3, ml), const2),
        pl.BlockSpec((2, ml), const2),
    ]
    out_specs = pl.BlockSpec((8, 128), lambda i: (i, 0))
    out_shape = jax.ShapeDtypeStruct((g * 8, 128), jnp.float32)

    flops = int(2 * r_dim * ml * d_embed + 16 * n_pad * p + 10 * c1 * mce
                + 8 * mq + 12 * r_dim * ml)
    transcend = int(2 * n_pad * p + c1 * mce + 2 * mq + r_dim * ml)
    bytes_acc = int(4 * (c1 * mce + 4 * mce + 3 * mq + d_embed * ml + r_dim * d_embed
                         + 5 * ml + n_pad + g * 8 * 128)
                    + 2 * (2 * n_pad * p))

    out = pl.pallas_call(
        _fused_losses_kernel,
        out_shape=out_shape,
        grid=(g,),
        in_specs=in_specs,
        out_specs=out_specs,
        compiler_params=pltpu.CompilerParams(
            dimension_semantics=("parallel",),            # v7x dual-TC over the point-row tiles
            vmem_limit_bytes=32 * 1024 * 1024),
        cost_estimate=pl.CostEstimate(flops=flops, transcendentals=transcend,
                                      bytes_accessed=bytes_acc),
    )(ce_logits, ce_labels, ce_f, val_f, pt_logits, pt_labels, pt_roww,
      sim_leftT, sim_right, sim_i, sim_f)
    # per-block partial sums -> final loss vector (lanes 0..5)
    return jnp.sum(out.reshape(g, 8, 128)[:, 0, :], axis=0)


# ------------------------------------------------------------------------------------------------
# Plain-JAX glue: point sampling (torch.no_grad in the original)
# ------------------------------------------------------------------------------------------------

def point_sample(img, coords):
    """img (N,1,H,W), coords (N,P,2) in [0,1] -> (N,1,P). grid_sample bilinear,
    align_corners=False, zero padding (mirrors detectron2 point_sample)."""
    N, C, H, W = img.shape
    grid = 2.0 * coords - 1.0
    x = ((grid[..., 0] + 1.0) * W - 1.0) / 2.0
    y = ((grid[..., 1] + 1.0) * H - 1.0) / 2.0
    x0 = jnp.floor(x)
    y0 = jnp.floor(y)
    x1 = x0 + 1.0
    y1 = y0 + 1.0
    wx1 = x - x0
    wx0 = 1.0 - wx1
    wy1 = y - y0
    wy0 = 1.0 - wy1
    flat = img.reshape(N, C, H * W)

    def gather(ix, iy):
        valid = (ix >= 0) & (ix <= W - 1) & (iy >= 0) & (iy <= H - 1)
        ixc = jnp.clip(ix, 0, W - 1).astype(jnp.int32)
        iyc = jnp.clip(iy, 0, H - 1).astype(jnp.int32)
        idx = (iyc * W + ixc)[:, None, :]
        vals = jnp.take_along_axis(flat, idx, axis=2)
        return jnp.where(valid[:, None, :], vals, 0.0)

    return (gather(x0, y0) * (wx0 * wy0)[:, None, :] +
            gather(x1, y0) * (wx1 * wy0)[:, None, :] +
            gather(x0, y1) * (wx0 * wy1)[:, None, :] +
            gather(x1, y1) * (wx1 * wy1)[:, None, :])


def calculate_uncertainty(logits):
    return -jnp.abs(logits)


def get_uncertain_point_coords_with_randomness(key, coarse_logits, num_points,
                                               oversample_ratio, importance_sample_ratio):
    N = coarse_logits.shape[0]
    num_sampled = int(num_points * oversample_ratio)
    k1, k2 = jax.random.split(key)
    point_coords = jax.random.uniform(k1, (N, num_sampled, 2), dtype=jnp.float32)
    point_logits = point_sample(coarse_logits, point_coords)
    uncert = calculate_uncertainty(point_logits)[:, 0, :]
    num_unc = int(importance_sample_ratio * num_points)
    num_rand = num_points - num_unc
    idx = jax.lax.top_k(uncert, num_unc)[1]
    sel = jnp.take_along_axis(point_coords, idx[..., None], axis=1)
    if num_rand > 0:
        rnd = jax.random.uniform(k2, (N, num_rand, 2), dtype=jnp.float32)
        sel = jnp.concatenate([sel, rnd], axis=1)
    return sel


@partial(jax.jit, static_argnames=("num_points", "oversample_ratio", "importance_sample_ratio"))
def _device_losses(key, src_masks, tgt_masks, pt_roww,
                   ce_logits, ce_labels, ce_f, val_f,
                   sim_leftT, sim_right, sim_i, sim_f,
                   *, num_points, oversample_ratio, importance_sample_ratio):
    """Point sampling + the single fused loss kernel, compiled as one XLA executable."""
    N = src_masks.shape[0]
    src4 = src_masks[:, None]
    tgt4 = tgt_masks[:, None]
    # point sampling was under torch.no_grad in the original -> stop_gradient
    coords = get_uncertain_point_coords_with_randomness(
        key, jax.lax.stop_gradient(src4), num_points, oversample_ratio, importance_sample_ratio)
    coords = jax.lax.stop_gradient(coords)
    pt_labels = jax.lax.stop_gradient(
        point_sample(tgt4, coords)[:, 0, :].reshape(N, num_points))
    pt_logits = point_sample(src4, coords)[:, 0, :].reshape(N, num_points)
    return fused_losses_call(
        ce_logits, ce_labels, ce_f, val_f,
        pt_logits.astype(jnp.bfloat16), pt_labels.astype(jnp.bfloat16), pt_roww,
        sim_leftT, sim_right, sim_i, sim_f)


# ------------------------------------------------------------------------------------------------
# Criterion
# ------------------------------------------------------------------------------------------------

class ViHubCriterionPallas:
    def __init__(self, num_classes, weight_dict, eos_coef, losses, num_points,
                 oversample_ratio, importance_sample_ratio, num_new_ins,
                 inference_select_threshold, disappear_case_weight=2):
        self.num_classes = num_classes
        self.weight_dict = weight_dict
        self.eos_coef = eos_coef
        self.losses = losses
        self.empty_weight = np.ones(num_classes + 1, dtype=np.float32)
        self.empty_weight[-1] = eos_coef
        self.num_points = num_points
        self.oversample_ratio = oversample_ratio
        self.importance_sample_ratio = importance_sample_ratio
        self.num_new_ins = num_new_ins
        self.inference_select_thr = inference_select_threshold
        self.disappear_case_weight = disappear_case_weight

    def forward(self, outputs, targets, key):
        assert len(outputs) == len(targets)
        indices = [out['indices'] for out in outputs]

        active = []
        for loss in self.losses:
            if loss == 'reid' and ('reid_outputs' not in outputs[0]):
                continue
            if loss == 'mask_iou' and ('pred_iou' not in outputs[0]):
                continue
            assert loss in ('labels', 'masks', 'valid', 'sim', 'disappear', 'reid', 'mask_iou'), \
                f'do you really want to compute {loss} loss?'
            active.append(loss)
        want = set(active)
        # TODO(synk): loss_cl ('reid'), loss_mask_iou and the aux_outputs / fq_outputs branches are
        # not exercised (inputs absent, skipped exactly as the original forward does).

        # ---- num_masks (host metadata only; single device => world_size = 1) -------------------
        num_masks = 0
        for _target, _output in zip(targets, outputs):
            vm = np.asarray(_target[0]['valid_inst'])
            num_masks += int(vm.sum()) - (1 if _output['disappear_tgt_id'] > -1 else 0)
        num_masks = max(float(num_masks), 1.0)

        # ---- host-side index/label/weight plumbing (matcher metadata is host numpy; no syncs) --
        ce_logit_rows, ce_label_rows, ce_w_rows, ce_seg_rows = [], [], [], []
        val_logit_rows, val_label_rows = [], []
        src_mask_rows, tgt_mask_rows = [], []
        sim_left_rows, sim_right_rows, sim_scale_rows = [], [], []
        sim_labels_np, sim_w_np, sim_cs_np, sim_cend_np = [], [], [], []
        sim_n_frames = 0
        n_dis_rows = 0
        col_off = 0

        for output_i, target_i, indice_i in zip(outputs, targets, indices):
            pred_logits = output_i['pred_logits'][0]                     # (Q, C+1) device
            Q = pred_logits.shape[0]
            d_id = int(output_i['disappear_tgt_id'])
            labels_np = np.asarray(target_i[0]['labels'])
            valid_all = np.asarray(target_i[0]['valid_inst'])
            src_all = np.asarray(indice_i[0][0])
            tgt_all = np.asarray(indice_i[0][1])
            valid = valid_all[tgt_all].copy()
            valid[tgt_all == d_id] = False
            src_idx = src_all[valid]
            tgt_idx = tgt_all[valid]

            # loss_ce (labels_v2) rows: int labels + per-row weight, segment 0
            tgt_classes = np.full((Q,), self.num_classes, dtype=np.int32)
            tgt_classes[src_idx] = labels_np[tgt_idx]
            weight = np.full((Q,), self.eos_coef, dtype=np.float32)
            weight[:-self.num_new_ins] = 1.0
            weight[src_idx] = 1.0
            ce_logit_rows.append(pred_logits)
            ce_label_rows.append(tgt_classes)
            ce_w_rows.append(weight)
            ce_seg_rows.append(np.zeros((Q,), dtype=np.float32))

            # loss_disappear rows: all-"no object" targets, class weight = eos_coef, segment 1
            if output_i['disappear_logits'] is not None:
                dl = output_i['disappear_logits'][0]                     # (n, C+1)
                n = dl.shape[0]
                ce_logit_rows.append(dl)
                ce_label_rows.append(np.full((n,), self.num_classes, dtype=np.int32))
                ce_w_rows.append(np.full((n,), float(self.empty_weight[self.num_classes]),
                                         dtype=np.float32))
                ce_seg_rows.append(np.ones((n,), dtype=np.float32))
                n_dis_rows += n

            # loss_valid rows (raw valid_inst, no disappear exclusion -- matches original)
            val_logit_rows.append(output_i['pred_valid'][0][:, 0])       # (Q,) device
            lbl = np.zeros((Q,), dtype=np.float32)
            lbl[src_all[valid_all]] = 1.0
            val_label_rows.append(lbl)

            # loss_masks rows (device gathers)
            src_mask_rows.append(output_i['pred_masks'][0][jnp.asarray(src_idx)])
            tgt_mask_rows.append(target_i[0]['masks'][jnp.asarray(tgt_idx)]
                                 .astype(output_i['pred_masks'].dtype))

            # loss_sim rows: per-frame block of the global right matrix, labels in global columns
            L = Q - self.num_new_ins
            if L > 0:
                fq = np.asarray(output_i['frame_embeds_indices'][0])     # (2, K)
                keep = fq[1] != d_id
                src_fq = fq[0][keep]
                tgt_fq = fq[1][keep]
                pred_embeds = output_i['pred_embeds'][:, 0, :]
                frame_embeds = output_i['frame_embeds'][:, 0, :]
                pos_frame = frame_embeds[jnp.asarray(src_fq)]
                right_f = jnp.concatenate([pos_frame, output_i['disappear_embed']], axis=0)
                ncls = int(src_fq.shape[0])
                sim_left_rows.append(pred_embeds[:L, :])
                sim_right_rows.append(right_f)
                gt_idx2label = {int(t): i for i, t in enumerate(tgt_fq)}
                gt_idx2label[d_id] = ncls
                lbl_f = np.full((L,), col_off + ncls, dtype=np.int32)
                # original builds weights with dtype=torch.int64 -> eos_coef truncates to 0 (kept)
                w_f = np.full((L,), float(int(self.eos_coef)), dtype=np.float32)
                for s, t in zip(src_idx, tgt_idx):
                    if int(s) >= L:
                        continue
                    lbl_f[int(s)] = col_off + gt_idx2label[int(t)]
                    w_f[int(s)] = 1.0
                sim_labels_np.append(lbl_f)
                sim_w_np.append(w_f / float(L))                          # per-frame mean folded in
                sim_cs_np.append(np.full((L,), col_off, dtype=np.int32))
                sim_cend_np.append(np.full((L,), col_off + ncls + 1, dtype=np.int32))
                # min(exp(logit_scale), 100) pre-computed outside the kernel (one scalar/frame)
                clamped = jnp.minimum(
                    jnp.exp(jnp.asarray(output_i['logit_scale'], dtype=jnp.float32)), 100.0)
                sim_scale_rows.append(jnp.broadcast_to(clamped, (L,)))
                col_off += ncls + 1
                sim_n_frames += 1

        # ---- device assembly: lane-dense, padded to fixed 128-lane / 8-sublane buckets ---------
        ce_labels_h = np.concatenate(ce_label_rows)
        mce = int(ce_labels_h.shape[0])
        mce_pad = _round_up(mce, 128)
        ce_logits = jnp.concatenate(ce_logit_rows, axis=0).astype(jnp.float32).T   # (C+1, mce)
        ce_logits = jnp.pad(ce_logits, ((0, 0), (0, mce_pad - mce)))
        ce_labels = jnp.asarray(np.pad(ce_labels_h, (0, mce_pad - mce)).astype(np.int32))[None, :]
        ce_w_h = np.pad(np.concatenate(ce_w_rows), (0, mce_pad - mce)).astype(np.float32)
        ce_seg_h = np.pad(np.concatenate(ce_seg_rows), (0, mce_pad - mce)).astype(np.float32)
        ce_f = jnp.asarray(np.stack([ce_w_h, ce_seg_h], axis=0))                   # (2, mce_pad)

        val_logits = jnp.concatenate(val_logit_rows, axis=0).astype(jnp.float32)
        mq = int(val_logits.shape[0])
        mq_pad = _round_up(mq, 128)
        val_logits = jnp.pad(val_logits, (0, mq_pad - mq))
        val_lbl_h = np.pad(np.concatenate(val_label_rows), (0, mq_pad - mq)).astype(np.float32)
        val_w_h = np.zeros((mq_pad,), np.float32)
        val_w_h[:mq] = 1.0 / mq                                 # mean folded into the weight row
        val_f = jnp.stack([val_logits, jnp.asarray(val_lbl_h), jnp.asarray(val_w_h)], axis=0)

        n_real = int(sum(int(r.shape[0]) for r in src_mask_rows))
        have_masks = n_real > 0
        H, W = outputs[0]['pred_masks'].shape[-2:]
        n_pad = _round_up(max(n_real, 1), _TILE_N)
        if have_masks:
            src_masks = jnp.concatenate(src_mask_rows, axis=0).astype(jnp.float32)
            tgt_masks = jnp.concatenate(tgt_mask_rows, axis=0).astype(jnp.float32)
            src_masks = jnp.pad(src_masks, ((0, n_pad - n_real), (0, 0), (0, 0)))
            tgt_masks = jnp.pad(tgt_masks, ((0, n_pad - n_real), (0, 0), (0, 0)))
        else:
            src_masks = jnp.zeros((n_pad, int(H), int(W)), jnp.float32)
            tgt_masks = jnp.zeros((n_pad, int(H), int(W)), jnp.float32)
        roww_h = np.zeros((n_pad, 1), np.float32)
        roww_h[:n_real, 0] = 1.0 / num_masks                    # 1/num_masks folded per row
        pt_roww = jnp.asarray(roww_h)

        have_sim = sim_n_frames > 0
        d_embed = int(outputs[0]['pred_embeds'].shape[-1])
        if have_sim:
            ml = int(sum(a.shape[0] for a in sim_labels_np))
            ml_pad = _round_up(ml, 128)
            r_real = col_off
            r_pad = _round_up(r_real, 8)
            sim_leftT = jnp.concatenate(sim_left_rows, axis=0).astype(jnp.float32).T  # (D, ml)
            sim_leftT = jnp.pad(sim_leftT, ((0, 0), (0, ml_pad - ml)))
            sim_right = jnp.concatenate(sim_right_rows, axis=0).astype(jnp.float32)   # (r, D)
            sim_right = jnp.pad(sim_right, ((0, r_pad - r_real), (0, 0)))
            lab_h = np.pad(np.concatenate(sim_labels_np), (0, ml_pad - ml)).astype(np.int32)
            cs_h = np.pad(np.concatenate(sim_cs_np), (0, ml_pad - ml)).astype(np.int32)
            cend_h = np.pad(np.concatenate(sim_cend_np), (0, ml_pad - ml),
                            constant_values=1).astype(np.int32)
            sim_i = jnp.asarray(np.stack([lab_h, cs_h, cend_h], axis=0))
            w_h = np.pad(np.concatenate(sim_w_np) / float(sim_n_frames),
                         (0, ml_pad - ml)).astype(np.float32)
            scale_dev = jnp.concatenate(sim_scale_rows, axis=0)
            scale_dev = jnp.pad(scale_dev, (0, ml_pad - ml), constant_values=1.0)
            sim_f = jnp.stack([jnp.asarray(w_h), scale_dev], axis=0)
        else:
            ml_pad, r_pad = 128, 8
            sim_leftT = jnp.zeros((d_embed, ml_pad), jnp.float32)
            sim_right = jnp.zeros((r_pad, d_embed), jnp.float32)
            sim_i = jnp.asarray(np.stack([np.zeros((ml_pad,), np.int32),
                                          np.zeros((ml_pad,), np.int32),
                                          np.ones((ml_pad,), np.int32)], axis=0))
            sim_f = jnp.stack([jnp.zeros((ml_pad,), jnp.float32),
                               jnp.ones((ml_pad,), jnp.float32)], axis=0)

        out_vec = _device_losses(
            key, src_masks, tgt_masks, pt_roww,
            ce_logits, ce_labels, ce_f, val_f,
            sim_leftT, sim_right, sim_i, sim_f,
            num_points=self.num_points,
            oversample_ratio=self.oversample_ratio,
            importance_sample_ratio=self.importance_sample_ratio)

        losses = {}
        if 'labels' in want:
            losses['loss_ce'] = out_vec[0]
        if 'masks' in want:
            if have_masks:
                losses['loss_mask'] = out_vec[2]
                losses['loss_dice'] = out_vec[3]
            else:
                z = jnp.sum(outputs[0]['pred_masks']) * 0.0
                losses['loss_mask'] = z
                losses['loss_dice'] = z
        if 'valid' in want:
            losses['loss_bce'] = out_vec[4]
        if 'sim' in want:
            losses['loss_sim'] = (out_vec[5] if have_sim
                                  else jnp.sum(outputs[0]['pred_embeds']) * 0.0)
        if 'disappear' in want:
            losses['loss_disappear'] = (out_vec[1] if n_dis_rows > 0
                                        else jnp.sum(outputs[0]['disappear_embeds']) * 0.0)
        return losses


# ------------------------------------------------------------------------------------------------
# Main: deterministic synthetic inputs
# ------------------------------------------------------------------------------------------------

if __name__ == "__main__":
    num_classes = 4          # C+1 = 5
    Q = 16                   # queries per frame
    num_new_ins = 8
    num_tgt = 4
    D = 32
    H = W = 16
    num_points = 16
    T = 2                    # number of frames

    key = jax.random.PRNGKey(0)
    keys = iter(jax.random.split(key, 64))
    nk = lambda: next(keys)

    # per-frame targets (matcher metadata — labels / valid_inst — stays host numpy)
    targets = []
    t_labels = [np.array([0, 1, 2, 3]), np.array([2, 0, 1, 3])]
    t_valid = [np.array([True, True, True, False]), np.array([True, True, False, True])]
    for f in range(T):
        masks = (jax.random.uniform(nk(), (num_tgt, H, W)) > 0.5).astype(jnp.float32)
        targets.append([{'labels': t_labels[f], 'valid_inst': t_valid[f], 'masks': masks}])

    # per-frame matcher indices (len == num_tgt to match loss_valid's indexing convention)
    frame_indices = [
        [(np.array([0, 2, 4, 6]), np.array([0, 1, 2, 3]))],
        [(np.array([1, 3, 5, 9]), np.array([2, 0, 3, 1]))],
    ]
    disappear_ids = [-1, 1]

    outputs = []
    for f in range(T):
        out = {
            'pred_logits': jax.random.normal(nk(), (1, Q, num_classes + 1), dtype=jnp.float32),
            'pred_masks': 2.0 * jax.random.normal(nk(), (1, Q, H, W), dtype=jnp.float32),
            'pred_valid': jax.random.normal(nk(), (1, Q, 1), dtype=jnp.float32),
            'pred_embeds': jax.random.normal(nk(), (Q, 1, D), dtype=jnp.float32),
            'frame_embeds': jax.random.normal(nk(), (num_tgt, 1, D), dtype=jnp.float32),
            'frame_embeds_indices': np.stack([np.arange(num_tgt), np.arange(num_tgt)])[None],
            'disappear_embed': jax.random.normal(nk(), (1, D), dtype=jnp.float32),
            'disappear_embeds': jax.random.normal(nk(), (1, D), dtype=jnp.float32),
            'logit_scale': jnp.asarray(2.0, dtype=jnp.float32),
            'disappear_tgt_id': disappear_ids[f],
            'disappear_logits': None if disappear_ids[f] < 0
            else jax.random.normal(nk(), (1, 2, num_classes + 1), dtype=jnp.float32),
            'indices': frame_indices[f],
        }
        outputs.append(out)

    criterion = ViHubCriterionPallas(
        num_classes=num_classes,
        weight_dict={'loss_ce': 2.0, 'loss_mask': 5.0, 'loss_dice': 5.0,
                     'loss_bce': 2.0, 'loss_sim': 0.5, 'loss_disappear': 2.0},
        eos_coef=0.1,
        losses=['labels', 'masks', 'valid', 'sim', 'disappear', 'reid', 'mask_iou'],
        num_points=num_points,
        oversample_ratio=3.0,
        importance_sample_ratio=0.75,
        num_new_ins=num_new_ins,
        inference_select_threshold=0.1,
    )

    losses = criterion.forward(outputs, targets, jax.random.PRNGKey(0))
    jax.block_until_ready(losses)
    assert all(np.isfinite(np.asarray(v)) for v in losses.values())
    print("KERNEL_OK")
</pallas_src>

<mosaic_0001>
module attributes {stable_mosaic.version = 11 : i64} {
  func.func @_fused_losses_kernel(%arg0: i32, %arg1: memref<5x128xf32, #tpu.memory_space<vmem>>, %arg2: memref<1x128xi32, #tpu.memory_space<vmem>>, %arg3: memref<2x128xf32, #tpu.memory_space<vmem>>, %arg4: memref<3x128xf32, #tpu.memory_space<vmem>>, %arg5: memref<16x16xbf16, #tpu.memory_space<vmem>>, %arg6: memref<16x16xbf16, #tpu.memory_space<vmem>>, %arg7: memref<16x1xf32, #tpu.memory_space<vmem>>, %arg8: memref<32x128xf32, #tpu.memory_space<vmem>>, %arg9: memref<16x32xf32, #tpu.memory_space<vmem>>, %arg10: memref<3x128xi32, #tpu.memory_space<vmem>>, %arg11: memref<2x128xf32, #tpu.memory_space<vmem>>, %arg12: memref<8x128xf32, #tpu.memory_space<vmem>>) attributes {dimension_semantics = [#tpu.dimension_semantics<parallel>], iteration_bounds = array<i64: 1>, scalar_prefetch = 0 : i64, scratch_operands = 0 : i64, tpu.core_type = #tpu.core_type<tc>, window_params = [{pipeline_mode = #tpu.pipeline_mode<synchronous>, transform_indices = @transform_0, window_bounds = array<i64: 5, 128>}, {pipeline_mode = #tpu.pipeline_mode<synchronous>, transform_indices = @transform_1, window_bounds = array<i64: 1, 128>}, {pipeline_mode = #tpu.pipeline_mode<synchronous>, transform_indices = @transform_2, window_bounds = array<i64: 2, 128>}, {pipeline_mode = #tpu.pipeline_mode<synchronous>, transform_indices = @transform_3, window_bounds = array<i64: 3, 128>}, {transform_indices = @transform_4, window_bounds = array<i64: 16, 16>}, {transform_indices = @transform_5, window_bounds = array<i64: 16, 16>}, {transform_indices = @transform_6, window_bounds = array<i64: 16, 1>}, {pipeline_mode = #tpu.pipeline_mode<synchronous>, transform_indices = @transform_7, window_bounds = array<i64: 32, 128>}, {pipeline_mode = #tpu.pipeline_mode<synchronous>, transform_indices = @transform_8, window_bounds = array<i64: 16, 32>}, {pipeline_mode = #tpu.pipeline_mode<synchronous>, transform_indices = @transform_9, window_bounds = array<i64: 3, 128>}, {pipeline_mode = #tpu.pipeline_mode<synchronous>, transform_indices = @transform_10, window_bounds = array<i64: 2, 128>}, {transform_indices = @transform_11, window_bounds = array<i64: 8, 128>}]} {
    %c0 = arith.constant 0 : index
    %c0_0 = arith.constant 0 : index
    %0 = vector.load %arg5[%c0, %c0_0] : memref<16x16xbf16, #tpu.memory_space<vmem>>, vector<16x16xbf16>
    %1 = arith.extf %0 : vector<16x16xbf16> to vector<16x16xf32>
    %c0_1 = arith.constant 0 : index
    %c0_2 = arith.constant 0 : index
    %2 = vector.load %arg6[%c0_1, %c0_2] : memref<16x16xbf16, #tpu.memory_space<vmem>>, vector<16x16xbf16>
    %3 = arith.extf %2 : vector<16x16xbf16> to vector<16x16xf32>
    %c0_3 = arith.constant 0 : index
    %c0_4 = arith.constant 0 : index
    %4 = vector.load %arg7[%c0_3, %c0_4] : memref<16x1xf32, #tpu.memory_space<vmem>>, vector<16x1xf32>
    %5 = math.absf %1 : vector<16x16xf32>
    %cst = arith.constant 0.000000e+00 : f32
    %6 = vector.broadcast %cst : f32 to vector<16x16xf32>
    %7 = arith.subf %6, %5 : vector<16x16xf32>
    %8 = math.exp %7 : vector<16x16xf32>
    %cst_5 = arith.constant 0.000000e+00 : f32
    %9 = vector.broadcast %cst_5 : f32 to vector<16x16xf32>
    %10 = arith.maximumf %1, %9 : vector<16x16xf32>
    %11 = arith.mulf %1, %3 : vector<16x16xf32>
    %12 = arith.subf %10, %11 : vector<16x16xf32>
    %13 = math.log1p %8 : vector<16x16xf32>
    %14 = arith.addf %12, %13 : vector<16x16xf32>
    %15 = vector.broadcast %4 : vector<16x1xf32> to vector<16x16xf32>
    %16 = arith.mulf %14, %15 : vector<16x16xf32>
    %cst_6 = arith.constant dense<0.000000e+00> : vector<16xf32>
    %17 = vector.multi_reduction <add>, %16, %cst_6 [0] : vector<16x16xf32> to vector<16xf32>
    %18 = vector.shape_cast %17 : vector<16xf32> to vector<1x16xf32>
    %cst_7 = arith.constant dense<0.000000e+00> : vector<1xf32>
    %19 = vector.multi_reduction <add>, %18, %cst_7 [1] : vector<1x16xf32> to vector<1xf32>
    %20 = vector.shape_cast %19 : vector<1xf32> to vector<1x1xf32>
    %cst_8 = arith.constant 6.250000e-02 : f32
    %21 = vector.broadcast %cst_8 : f32 to vector<1x1xf32>
    %22 = arith.mulf %20, %21 : vector<1x1xf32>
    %cst_9 = arith.constant 1.000000e+00 : f32
    %23 = vector.broadcast %cst_9 : f32 to vector<16x16xf32>
    %24 = arith.addf %23, %8 : vector<16x16xf32>
    %25 = tpu.reciprocal %24 {approx = true} : vector<16x16xf32> -> vector<16x16xf32>
    %cst_10 = arith.constant 0.000000e+00 : f32
    %26 = vector.broadcast %cst_10 : f32 to vector<16x16xf32>
    %27 = arith.cmpf oge, %1, %26 : vector<16x16xf32>
    %28 = arith.mulf %8, %25 : vector<16x16xf32>
    %29 = arith.select %27, %25, %28 : vector<16x16xi1>, vector<16x16xf32>
    %30 = arith.mulf %29, %3 : vector<16x16xf32>
    %cst_11 = arith.constant dense<0.000000e+00> : vector<16xf32>
    %31 = vector.multi_reduction <add>, %30, %cst_11 [1] : vector<16x16xf32> to vector<16xf32>
    %32 = vector.shape_cast %31 : vector<16xf32> to vector<16x1xf32>
    %cst_12 = arith.constant 2.000000e+00 : f32
    %33 = vector.broadcast %cst_12 : f32 to vector<16x1xf32>
    %34 = arith.mulf %33, %32 : vector<16x1xf32>
    %35 = arith.addf %29, %3 : vector<16x16xf32>
    %cst_13 = arith.constant dense<0.000000e+00> : vector<16xf32>
    %36 = vector.multi_reduction <add>, %35, %cst_13 [1] : vector<16x16xf32> to vector<16xf32>
    %37 = vector.shape_cast %36 : vector<16xf32> to vector<16x1xf32>
    %cst_14 = arith.constant 1.000000e+00 : f32
    %38 = vector.broadcast %cst_14 : f32 to vector<16x1xf32>
    %39 = arith.addf %34, %38 : vector<16x1xf32>
    %cst_15 = arith.constant 1.000000e+00 : f32
    %40 = vector.broadcast %cst_15 : f32 to vector<16x1xf32>
    %41 = arith.addf %37, %40 : vector<16x1xf32>
    %42 = arith.divf %39, %41 : vector<16x1xf32>
    %cst_16 = arith.constant 1.000000e+00 : f32
    %43 = vector.broadcast %cst_16 : f32 to vector<16x1xf32>
    %44 = arith.subf %43, %42 : vector<16x1xf32>
    %45 = arith.mulf %44, %4 : vector<16x1xf32>
    %cst_17 = arith.constant dense<0.000000e+00> : vector<1xf32>
    %46 = vector.multi_reduction <add>, %45, %cst_17 [0] : vector<16x1xf32> to vector<1xf32>
    %47 = vector.shape_cast %46 : vector<1xf32> to vector<1x1xf32>
    %c0_i32 = arith.constant 0 : i32
    %48 = arith.cmpi eq, %arg0, %c0_i32 : i32
    %49 = arith.extui %48 : i1 to i32
    %c0_i32_18 = arith.constant 0 : i32
    %50 = arith.cmpi ne, %49, %c0_i32_18 : i32
    scf.if %50 {
      %c0_21 = arith.constant 0 : index
      %c0_22 = arith.constant 0 : index
      %54 = vector.load %arg1[%c0_21, %c0_22] : memref<5x128xf32, #tpu.memory_space<vmem>>, vector<5x128xf32>
      %c0_23 = arith.constant 0 : index
      %c0_24 = arith.constant 0 : index
      %55 = vector.load %arg2[%c0_23, %c0_24] : memref<1x128xi32, #tpu.memory_space<vmem>>, vector<1x128xi32>
      %c0_25 = arith.constant 0 : index
      %c0_26 = arith.constant 0 : index
      %56 = vector.load %arg3[%c0_25, %c0_26] : memref<2x128xf32, #tpu.memory_space<vmem>>, vector<1x128xf32>
      %c1 = arith.constant 1 : index
      %c0_27 = arith.constant 0 : index
      %57 = vector.load %arg3[%c1, %c0_27] : memref<2x128xf32, #tpu.memory_space<vmem>>, vector<1x128xf32>
      %cst_28 = arith.constant dense<0xFF800000> : vector<128xf32>
      %58 = vector.multi_reduction <maximumf>, %54, %cst_28 [0] : vector<5x128xf32> to vector<128xf32>
      %59 = vector.shape_cast %58 : vector<128xf32> to vector<1x128xf32>
      %60 = vector.broadcast %59 : vector<1x128xf32> to vector<5x128xf32>
      %61 = arith.subf %54, %60 : vector<5x128xf32>
      %62 = math.exp %61 : vector<5x128xf32>
      %cst_29 = arith.constant dense<0.000000e+00> : vector<128xf32>
      %63 = vector.multi_reduction <add>, %62, %cst_29 [0] : vector<5x128xf32> to vector<128xf32>
      %64 = vector.shape_cast %63 : vector<128xf32> to vector<1x128xf32>
      %65 = math.log %64 : vector<1x128xf32>
      %66 = tpu.iota {dimensions = array<i32: 0>} : vector<5x128xi32>
      %67 = vector.broadcast %55 : vector<1x128xi32> to vector<5x128xi32>
      %68 = arith.cmpi eq, %66, %67 : vector<5x128xi32>
      %cst_30 = arith.constant 0.000000e+00 : f32
      %69 = vector.broadcast %cst_30 : f32 to vector<5x128xf32>
      %70 = arith.select %68, %61, %69 : vector<5x128xi1>, vector<5x128xf32>
      %cst_31 = arith.constant dense<0.000000e+00> : vector<128xf32>
      %71 = vector.multi_reduction <add>, %70, %cst_31 [0] : vector<5x128xf32> to vector<128xf32>
      %72 = vector.shape_cast %71 : vector<128xf32> to vector<1x128xf32>
      %73 = arith.subf %65, %72 : vector<1x128xf32>
      %cst_32 = arith.constant 1.000000e+00 : f32
      %74 = vector.broadcast %cst_32 : f32 to vector<1x128xf32>
      %75 = arith.subf %74, %57 : vector<1x128xf32>
      %76 = arith.mulf %56, %75 : vector<1x128xf32>
      %77 = arith.mulf %56, %57 : vector<1x128xf32>
      %78 = arith.mulf %73, %76 : vector<1x128xf32>
      %cst_33 = arith.constant dense<0.000000e+00> : vector<1xf32>
      %79 = vector.multi_reduction <add>, %78, %cst_33 [1] : vector<1x128xf32> to vector<1xf32>
      %80 = vector.shape_cast %79 : vector<1xf32> to vector<1x1xf32>
      %cst_34 = arith.constant dense<0.000000e+00> : vector<1xf32>
      %81 = vector.multi_reduction <add>, %76, %cst_34 [1] : vector<1x128xf32> to vector<1xf32>
      %82 = vector.shape_cast %81 : vector<1xf32> to vector<1x1xf32>
      %cst_35 = arith.constant 9.99999996E-13 : f32
      %83 = vector.broadcast %cst_35 : f32 to vector<1x1xf32>
      %84 = arith.maximumf %82, %83 : vector<1x1xf32>
      %85 = arith.divf %80, %84 : vector<1x1xf32>
      %86 = arith.mulf %73, %77 : vector<1x128xf32>
      %cst_36 = arith.constant dense<0.000000e+00> : vector<1xf32>
      %87 = vector.multi_reduction <add>, %86, %cst_36 [1] : vector<1x128xf32> to vector<1xf32>
      %88 = vector.shape_cast %87 : vector<1xf32> to vector<1x1xf32>
      %cst_37 = arith.constant dense<0.000000e+00> : vector<1xf32>
      %89 = vector.multi_reduction <add>, %77, %cst_37 [1] : vector<1x128xf32> to vector<1xf32>
      %90 = vector.shape_cast %89 : vector<1xf32> to vector<1x1xf32>
      %cst_38 = arith.constant 9.99999996E-13 : f32
      %91 = vector.broadcast %cst_38 : f32 to vector<1x1xf32>
      %92 = arith.maximumf %90, %91 : vector<1x1xf32>
      %93 = arith.divf %88, %92 : vector<1x1xf32>
      %c0_39 = arith.constant 0 : index
      %c0_40 = arith.constant 0 : index
      %94 = vector.load %arg4[%c0_39, %c0_40] : memref<3x128xf32, #tpu.memory_space<vmem>>, vector<1x128xf32>
      %c1_41 = arith.constant 1 : index
      %c0_42 = arith.constant 0 : index
      %95 = vector.load %arg4[%c1_41, %c0_42] : memref<3x128xf32, #tpu.memory_space<vmem>>, vector<1x128xf32>
      %c2 = arith.constant 2 : index
      %c0_43 = arith.constant 0 : index
      %96 = vector.load %arg4[%c2, %c0_43] : memref<3x128xf32, #tpu.memory_space<vmem>>, vector<1x128xf32>
      %cst_44 = arith.constant 0.000000e+00 : f32
      %97 = vector.broadcast %cst_44 : f32 to vector<1x128xf32>
      %98 = arith.maximumf %94, %97 : vector<1x128xf32>
      %99 = arith.mulf %94, %95 : vector<1x128xf32>
      %100 = arith.subf %98, %99 : vector<1x128xf32>
      %101 = math.absf %94 : vector<1x128xf32>
      %cst_45 = arith.constant 0.000000e+00 : f32
      %102 = vector.broadcast %cst_45 : f32 to vector<1x128xf32>
      %103 = arith.subf %102, %101 : vector<1x128xf32>
      %104 = math.exp %103 : vector<1x128xf32>
      %105 = math.log1p %104 : vector<1x128xf32>
      %106 = arith.addf %100, %105 : vector<1x128xf32>
      %107 = arith.mulf %106, %96 : vector<1x128xf32>
      %cst_46 = arith.constant dense<0.000000e+00> : vector<1xf32>
      %108 = vector.multi_reduction <add>, %107, %cst_46 [1] : vector<1x128xf32> to vector<1xf32>
      %109 = vector.shape_cast %108 : vector<1xf32> to vector<1x1xf32>
      %c0_47 = arith.constant 0 : index
      %c0_48 = arith.constant 0 : index
      %110 = vector.load %arg8[%c0_47, %c0_48] : memref<32x128xf32, #tpu.memory_space<vmem>>, vector<32x128xf32>
      %c0_49 = arith.constant 0 : index
      %c0_50 = arith.constant 0 : index
      %111 = vector.load %arg9[%c0_49, %c0_50] : memref<16x32xf32, #tpu.memory_space<vmem>>, vector<16x32xf32>
      %112 = arith.mulf %110, %110 : vector<32x128xf32>
      %cst_51 = arith.constant dense<0.000000e+00> : vector<128xf32>
      %113 = vector.multi_reduction <add>, %112, %cst_51 [0] : vector<32x128xf32> to vector<128xf32>
      %114 = vector.shape_cast %113 : vector<128xf32> to vector<1x128xf32>
      %cst_52 = arith.constant 1.000000e-24 : f32
      %115 = vector.broadcast %cst_52 : f32 to vector<1x128xf32>
      %116 = arith.maximumf %114, %115 : vector<1x128xf32>
      %117 = math.rsqrt %116 : vector<1x128xf32>
      %118 = vector.broadcast %117 : vector<1x128xf32> to vector<32x128xf32>
      %119 = arith.mulf %110, %118 : vector<32x128xf32>
      %120 = arith.mulf %111, %111 : vector<16x32xf32>
      %cst_53 = arith.constant dense<0.000000e+00> : vector<16xf32>
      %121 = vector.multi_reduction <add>, %120, %cst_53 [1] : vector<16x32xf32> to vector<16xf32>
      %122 = vector.shape_cast %121 : vector<16xf32> to vector<16x1xf32>
      %cst_54 = arith.constant 1.000000e-24 : f32
      %123 = vector.broadcast %cst_54 : f32 to vector<16x1xf32>
      %124 = arith.maximumf %122, %123 : vector<16x1xf32>
      %125 = math.rsqrt %124 : vector<16x1xf32>
      %126 = vector.broadcast %125 : vector<16x1xf32> to vector<16x32xf32>
      %127 = arith.mulf %111, %126 : vector<16x32xf32>
      %cst_55 = arith.constant dense<0.000000e+00> : vector<16x128xf32>
      %128 = tpu.matmul %127, %119, %cst_55 {dimension_numbers = #tpu.dot_dimension_numbers<[1], [0], [0], [1], [0, 0, 1, 1], [], []>} : vector<16x32xf32>, vector<32x128xf32>, vector<16x128xf32> -> vector<16x128xf32>
      %c1_56 = arith.constant 1 : index
      %c0_57 = arith.constant 0 : index
      %129 = vector.load %arg11[%c1_56, %c0_57] : memref<2x128xf32, #tpu.memory_space<vmem>>, vector<1x128xf32>
      %130 = vector.broadcast %129 : vector<1x128xf32> to vector<16x128xf32>
      %131 = arith.mulf %128, %130 : vector<16x128xf32>
      %c0_58 = arith.constant 0 : index
      %c0_59 = arith.constant 0 : index
      %132 = vector.load %arg10[%c0_58, %c0_59] : memref<3x128xi32, #tpu.memory_space<vmem>>, vector<1x128xi32>
      %c1_60 = arith.constant 1 : index
      %c0_61 = arith.constant 0 : index
      %133 = vector.load %arg10[%c1_60, %c0_61] : memref<3x128xi32, #tpu.memory_space<vmem>>, vector<1x128xi32>
      %c2_62 = arith.constant 2 : index
      %c0_63 = arith.constant 0 : index
      %134 = vector.load %arg10[%c2_62, %c0_63] : memref<3x128xi32, #tpu.memory_space<vmem>>, vector<1x128xi32>
      %135 = tpu.iota {dimensions = array<i32: 0>} : vector<16x128xi32>
      %136 = vector.broadcast %133 : vector<1x128xi32> to vector<16x128xi32>
      %137 = arith.cmpi sge, %135, %136 : vector<16x128xi32>
      %138 = vector.broadcast %134 : vector<1x128xi32> to vector<16x128xi32>
      %139 = arith.cmpi slt, %135, %138 : vector<16x128xi32>
      %140 = arith.andi %137, %139 : vector<16x128xi1>
      %cst_64 = arith.constant -1.000000e+30 : f32
      %141 = vector.broadcast %cst_64 : f32 to vector<16x128xf32>
      %142 = arith.select %140, %131, %141 : vector<16x128xi1>, vector<16x128xf32>
      %cst_65 = arith.constant dense<0xFF800000> : vector<128xf32>
      %143 = vector.multi_reduction <maximumf>, %142, %cst_65 [0] : vector<16x128xf32> to vector<128xf32>
      %144 = vector.shape_cast %143 : vector<128xf32> to vector<1x128xf32>
      %145 = vector.broadcast %144 : vector<1x128xf32> to vector<16x128xf32>
      %146 = arith.subf %142, %145 : vector<16x128xf32>
      %147 = math.exp %146 : vector<16x128xf32>
      %cst_66 = arith.constant 0.000000e+00 : f32
      %148 = vector.broadcast %cst_66 : f32 to vector<16x128xf32>
      %149 = arith.select %140, %147, %148 : vector<16x128xi1>, vector<16x128xf32>
      %cst_67 = arith.constant dense<0.000000e+00> : vector<128xf32>
      %150 = vector.multi_reduction <add>, %149, %cst_67 [0] : vector<16x128xf32> to vector<128xf32>
      %151 = vector.shape_cast %150 : vector<128xf32> to vector<1x128xf32>
      %152 = math.log %151 : vector<1x128xf32>
      %153 = vector.broadcast %132 : vector<1x128xi32> to vector<16x128xi32>
      %154 = arith.cmpi eq, %135, %153 : vector<16x128xi32>
      %cst_68 = arith.constant 0.000000e+00 : f32
      %155 = vector.broadcast %cst_68 : f32 to vector<16x128xf32>
      %156 = arith.select %154, %146, %155 : vector<16x128xi1>, vector<16x128xf32>
      %cst_69 = arith.constant dense<0.000000e+00> : vector<128xf32>
      %157 = vector.multi_reduction <add>, %156, %cst_69 [0] : vector<16x128xf32> to vector<128xf32>
      %158 = vector.shape_cast %157 : vector<128xf32> to vector<1x128xf32>
      %159 = arith.subf %152, %158 : vector<1x128xf32>
      %c0_70 = arith.constant 0 : index
      %c0_71 = arith.constant 0 : index
      %160 = vector.load %arg11[%c0_70, %c0_71] : memref<2x128xf32, #tpu.memory_space<vmem>>, vector<1x128xf32>
      %161 = arith.mulf %159, %160 : vector<1x128xf32>
      %cst_72 = arith.constant dense<0.000000e+00> : vector<1xf32>
      %162 = vector.multi_reduction <add>, %161, %cst_72 [1] : vector<1x128xf32> to vector<1xf32>
      %163 = vector.shape_cast %162 : vector<1xf32> to vector<1x1xf32>
      %164 = tpu.iota {dimensions = array<i32: 0>} : vector<8x128xi32>
      %165 = tpu.iota {dimensions = array<i32: 1>} : vector<8x128xi32>
      %c0_i32_73 = arith.constant 0 : i32
      %166 = vector.broadcast %c0_i32_73 : i32 to vector<8x128xi32>
      %167 = arith.cmpi eq, %164, %166 : vector<8x128xi32>
      %c0_i32_74 = arith.constant 0 : i32
      %168 = vector.broadcast %c0_i32_74 : i32 to vector<8x128xi32>
      %169 = arith.cmpi eq, %165, %168 : vector<8x128xi32>
      %170 = arith.andi %167, %169 : vector<8x128xi1>
      %171 = vector.shape_cast %85 : vector<1x1xf32> to vector<1x1xf32>
      %172 = vector.broadcast %171 : vector<1x1xf32> to vector<8x128xf32>
      %cst_75 = arith.constant 0.000000e+00 : f32
      %173 = vector.broadcast %cst_75 : f32 to vector<8x128xf32>
      %174 = arith.select %170, %172, %173 : vector<8x128xi1>, vector<8x128xf32>
      %c1_i32 = arith.constant 1 : i32
      %175 = vector.broadcast %c1_i32 : i32 to vector<8x128xi32>
      %176 = arith.cmpi eq, %165, %175 : vector<8x128xi32>
      %177 = arith.andi %167, %176 : vector<8x128xi1>
      %178 = vector.shape_cast %93 : vector<1x1xf32> to vector<1x1xf32>
      %179 = vector.broadcast %178 : vector<1x1xf32> to vector<8x128xf32>
      %cst_76 = arith.constant 0.000000e+00 : f32
      %180 = vector.broadcast %cst_76 : f32 to vector<8x128xf32>
      %181 = arith.select %177, %179, %180 : vector<8x128xi1>, vector<8x128xf32>
      %182 = arith.addf %174, %181 : vector<8x128xf32>
      %c2_i32 = arith.constant 2 : i32
      %183 = vector.broadcast %c2_i32 : i32 to vector<8x128xi32>
      %184 = arith.cmpi eq, %165, %183 : vector<8x128xi32>
      %185 = arith.andi %167, %184 : vector<8x128xi1>
      %186 = vector.shape_cast %22 : vector<1x1xf32> to vector<1x1xf32>
      %187 = vector.broadcast %186 : vector<1x1xf32> to vector<8x128xf32>
      %cst_77 = arith.constant 0.000000e+00 : f32
      %188 = vector.broadcast %cst_77 : f32 to vector<8x128xf32>
      %189 = arith.select %185, %187, %188 : vector<8x128xi1>, vector<8x128xf32>
      %190 = arith.addf %182, %189 : vector<8x128xf32>
      %c3_i32 = arith.constant 3 : i32
      %191 = vector.broadcast %c3_i32 : i32 to vector<8x128xi32>
      %192 = arith.cmpi eq, %165, %191 : vector<8x128xi32>
      %193 = arith.andi %167, %192 : vector<8x128xi1>
      %194 = vector.shape_cast %47 : vector<1x1xf32> to vector<1x1xf32>
      %195 = vector.broadcast %194 : vector<1x1xf32> to vector<8x128xf32>
      %cst_78 = arith.constant 0.000000e+00 : f32
      %196 = vector.broadcast %cst_78 : f32 to vector<8x128xf32>
      %197 = arith.select %193, %195, %196 : vector<8x128xi1>, vector<8x128xf32>
      %198 = arith.addf %190, %197 : vector<8x128xf32>
      %c4_i32 = arith.constant 4 : i32
      %199 = vector.broadcast %c4_i32 : i32 to vector<8x128xi32>
      %200 = arith.cmpi eq, %165, %199 : vector<8x128xi32>
      %201 = arith.andi %167, %200 : vector<8x128xi1>
      %202 = vector.shape_cast %109 : vector<1x1xf32> to vector<1x1xf32>
      %203 = vector.broadcast %202 : vector<1x1xf32> to vector<8x128xf32>
      %cst_79 = arith.constant 0.000000e+00 : f32
      %204 = vector.broadcast %cst_79 : f32 to vector<8x128xf32>
      %205 = arith.select %201, %203, %204 : vector<8x128xi1>, vector<8x128xf32>
      %206 = arith.addf %198, %205 : vector<8x128xf32>
      %c5_i32 = arith.constant 5 : i32
      %207 = vector.broadcast %c5_i32 : i32 to vector<8x128xi32>
      %208 = arith.cmpi eq, %165, %207 : vector<8x128xi32>
      %209 = arith.andi %167, %208 : vector<8x128xi1>
      %210 = vector.shape_cast %163 : vector<1x1xf32> to vector<1x1xf32>
      %211 = vector.broadcast %210 : vector<1x1xf32> to vector<8x128xf32>
      %cst_80 = arith.constant 0.000000e+00 : f32
      %212 = vector.broadcast %cst_80 : f32 to vector<8x128xf32>
      %213 = arith.select %209, %211, %212 : vector<8x128xi1>, vector<8x128xf32>
      %214 = arith.addf %206, %213 : vector<8x128xf32>
      %c0_81 = arith.constant 0 : index
      %c0_82 = arith.constant 0 : index
      %215 = vector.load %arg12[%c0_81, %c0_82] : memref<8x128xf32, #tpu.memory_space<vmem>>, vector<8x128xf32>
      tpu.vector_store %arg12[%c0_81, %c0_82], %214 {strides = array<i32>} : memref<8x128xf32, #tpu.memory_space<vmem>>, vector<8x128xf32>,
    } else {
    }
    %c0_i32_19 = arith.constant 0 : i32
    %51 = arith.cmpi ne, %arg0, %c0_i32_19 : i32
    %52 = arith.extui %51 : i1 to i32
    %c0_i32_20 = arith.constant 0 : i32
    %53 = arith.cmpi ne, %52, %c0_i32_20 : i32
    scf.if %53 {
      %cst_21 = arith.constant 0.000000e+00 : f32
      %54 = vector.broadcast %cst_21 : f32 to vector<1x1xf32>
      %55 = tpu.iota {dimensions = array<i32: 0>} : vector<8x128xi32>
      %56 = tpu.iota {dimensions = array<i32: 1>} : vector<8x128xi32>
      %c0_i32_22 = arith.constant 0 : i32
      %57 = vector.broadcast %c0_i32_22 : i32 to vector<8x128xi32>
      %58 = arith.cmpi eq, %55, %57 : vector<8x128xi32>
      %c0_i32_23 = arith.constant 0 : i32
      %59 = vector.broadcast %c0_i32_23 : i32 to vector<8x128xi32>
      %60 = arith.cmpi eq, %56, %59 : vector<8x128xi32>
      %61 = arith.andi %58, %60 : vector<8x128xi1>
      %62 = vector.shape_cast %54 : vector<1x1xf32> to vector<1x1xf32>
      %63 = vector.broadcast %62 : vector<1x1xf32> to vector<8x128xf32>
      %cst_24 = arith.constant 0.000000e+00 : f32
      %64 = vector.broadcast %cst_24 : f32 to vector<8x128xf32>
      %65 = arith.select %61, %63, %64 : vector<8x128xi1>, vector<8x128xf32>
      %c1_i32 = arith.constant 1 : i32
      %66 = vector.broadcast %c1_i32 : i32 to vector<8x128xi32>
      %67 = arith.cmpi eq, %56, %66 : vector<8x128xi32>
      %68 = arith.andi %58, %67 : vector<8x128xi1>
      %69 = vector.shape_cast %54 : vector<1x1xf32> to vector<1x1xf32>
      %70 = vector.broadcast %69 : vector<1x1xf32> to vector<8x128xf32>
      %cst_25 = arith.constant 0.000000e+00 : f32
      %71 = vector.broadcast %cst_25 : f32 to vector<8x128xf32>
      %72 = arith.select %68, %70, %71 : vector<8x128xi1>, vector<8x128xf32>
      %73 = arith.addf %65, %72 : vector<8x128xf32>
      %c2_i32 = arith.constant 2 : i32
      %74 = vector.broadcast %c2_i32 : i32 to vector<8x128xi32>
      %75 = arith.cmpi eq, %56, %74 : vector<8x128xi32>
      %76 = arith.andi %58, %75 : vector<8x128xi1>
      %77 = vector.shape_cast %22 : vector<1x1xf32> to vector<1x1xf32>
      %78 = vector.broadcast %77 : vector<1x1xf32> to vector<8x128xf32>
      %cst_26 = arith.constant 0.000000e+00 : f32
      %79 = vector.broadcast %cst_26 : f32 to vector<8x128xf32>
      %80 = arith.select %76, %78, %79 : vector<8x128xi1>, vector<8x128xf32>
      %81 = arith.addf %73, %80 : vector<8x128xf32>
      %c3_i32 = arith.constant 3 : i32
      %82 = vector.broadcast %c3_i32 : i32 to vector<8x128xi32>
      %83 = arith.cmpi eq, %56, %82 : vector<8x128xi32>
      %84 = arith.andi %58, %83 : vector<8x128xi1>
      %85 = vector.shape_cast %47 : vector<1x1xf32> to vector<1x1xf32>
      %86 = vector.broadcast %85 : vector<1x1xf32> to vector<8x128xf32>
      %cst_27 = arith.constant 0.000000e+00 : f32
      %87 = vector.broadcast %cst_27 : f32 to vector<8x128xf32>
      %88 = arith.select %84, %86, %87 : vector<8x128xi1>, vector<8x128xf32>
      %89 = arith.addf %81, %88 : vector<8x128xf32>
      %c4_i32 = arith.constant 4 : i32
      %90 = vector.broadcast %c4_i32 : i32 to vector<8x128xi32>
      %91 = arith.cmpi eq, %56, %90 : vector<8x128xi32>
      %92 = arith.andi %58, %91 : vector<8x128xi1>
      %93 = vector.shape_cast %54 : vector<1x1xf32> to vector<1x1xf32>
      %94 = vector.broadcast %93 : vector<1x1xf32> to vector<8x128xf32>
      %cst_28 = arith.constant 0.000000e+00 : f32
      %95 = vector.broadcast %cst_28 : f32 to vector<8x128xf32>
      %96 = arith.select %92, %94, %95 : vector<8x128xi1>, vector<8x128xf32>
      %97 = arith.addf %89, %96 : vector<8x128xf32>
      %c5_i32 = arith.constant 5 : i32
      %98 = vector.broadcast %c5_i32 : i32 to vector<8x128xi32>
      %99 = arith.cmpi eq, %56, %98 : vector<8x128xi32>
      %100 = arith.andi %58, %99 : vector<8x128xi1>
      %101 = vector.shape_cast %54 : vector<1x1xf32> to vector<1x1xf32>
      %102 = vector.broadcast %101 : vector<1x1xf32> to vector<8x128xf32>
      %cst_29 = arith.constant 0.000000e+00 : f32
      %103 = vector.broadcast %cst_29 : f32 to vector<8x128xf32>
      %104 = arith.select %100, %102, %103 : vector<8x128xi1>, vector<8x128xf32>
      %105 = arith.addf %97, %104 : vector<8x128xf32>
      %c0_30 = arith.constant 0 : index
      %c0_31 = arith.constant 0 : index
      %106 = vector.load %arg12[%c0_30, %c0_31] : memref<8x128xf32, #tpu.memory_space<vmem>>, vector<8x128xf32>
      tpu.vector_store %arg12[%c0_30, %c0_31], %105 {strides = array<i32>} : memref<8x128xf32, #tpu.memory_space<vmem>>, vector<8x128xf32>,
    } else {
    }
    return
  }
  func.func @transform_0(%arg0: i32) -> (i32, i32) {
    %c0_i32 = arith.constant 0 : i32
    %c0_i32_0 = arith.constant 0 : i32
    %c0_i32_1 = arith.constant 0 : i32
    return %c0_i32, %c0_i32_0 : i32, i32
  }
  func.func @transform_1(%arg0: i32) -> (i32, i32) {
    %c0_i32 = arith.constant 0 : i32
    %c0_i32_0 = arith.constant 0 : i32
    %c0_i32_1 = arith.constant 0 : i32
    return %c0_i32, %c0_i32_0 : i32, i32
  }
  func.func @transform_2(%arg0: i32) -> (i32, i32) {
    %c0_i32 = arith.constant 0 : i32
    %c0_i32_0 = arith.constant 0 : i32
    %c0_i32_1 = arith.constant 0 : i32
    return %c0_i32, %c0_i32_0 : i32, i32
  }
  func.func @transform_3(%arg0: i32) -> (i32, i32) {
    %c0_i32 = arith.constant 0 : i32
    %c0_i32_0 = arith.constant 0 : i32
    %c0_i32_1 = arith.constant 0 : i32
    return %c0_i32, %c0_i32_0 : i32, i32
  }
  func.func @transform_4(%arg0: i32) -> (i32, i32) {
    %c0_i32 = arith.constant 0 : i32
    %c0_i32_0 = arith.constant 0 : i32
    return %arg0, %c0_i32 : i32, i32
  }
  func.func @transform_5(%arg0: i32) -> (i32, i32) {
    %c0_i32 = arith.constant 0 : i32
    %c0_i32_0 = arith.constant 0 : i32
    return %arg0, %c0_i32 : i32, i32
  }
  func.func @transform_6(%arg0: i32) -> (i32, i32) {
    %c0_i32 = arith.constant 0 : i32
    %c0_i32_0 = arith.constant 0 : i32
    return %arg0, %c0_i32 : i32, i32
  }
  func.func @transform_7(%arg0: i32) -> (i32, i32) {
    %c0_i32 = arith.constant 0 : i32
    %c0_i32_0 = arith.constant 0 : i32
    %c0_i32_1 = arith.constant 0 : i32
    return %c0_i32, %c0_i32_0 : i32, i32
  }
  func.func @transform_8(%arg0: i32) -> (i32, i32) {
    %c0_i32 = arith.constant 0 : i32
    %c0_i32_0 = arith.constant 0 : i32
    %c0_i32_1 = arith.constant 0 : i32
    return %c0_i32, %c0_i32_0 : i32, i32
  }
  func.func @transform_9(%arg0: i32) -> (i32, i32) {
    %c0_i32 = arith.constant 0 : i32
    %c0_i32_0 = arith.constant 0 : i32
    %c0_i32_1 = arith.constant 0 : i32
    return %c0_i32, %c0_i32_0 : i32, i32
  }
  func.func @transform_10(%arg0: i32) -> (i32, i32) {
    %c0_i32 = arith.constant 0 : i32
    %c0_i32_0 = arith.constant 0 : i32
    %c0_i32_1 = arith.constant 0 : i32
    return %c0_i32, %c0_i32_0 : i32, i32
  }
  func.func @transform_11(%arg0: i32) -> (i32, i32) {
    %c0_i32 = arith.constant 0 : i32
    %c0_i32_0 = arith.constant 0 : i32
    return %arg0, %c0_i32 : i32, i32
  }
}

</mosaic_0001>

<llo_original>
// kernel: _device_losses.1
$region0: #{_device_losses.1}
  #allocation0 [shape = 'u32[]', space=smem, size = 0x4, offset = 0x4, fixed_abs, tag = 'smem constant byte address 0x4 - core index']
  #allocation1 [shape = 'u32[144,128]{1,0:T(1,128)}', space=vmem, size = 0x12000, scoped, tag = 'internal scratch']
  %s0 = inlined_call_operand.vmem [shape: f32[5,128], index: 0, kind: input, shape index: {}]
  %s1 = inlined_call_operand.vmem [shape: s32[1,128], index: 1, kind: input, shape index: {}]
  %s2 = inlined_call_operand.vmem [shape: f32[2,128], index: 2, kind: input, shape index: {}]
  %s3 = inlined_call_operand.vmem [shape: f32[3,128], index: 3, kind: input, shape index: {}]
  %s4 = inlined_call_operand.vmem [shape: bf16[16,16], index: 4, kind: input, shape index: {}]
  %s5 = inlined_call_operand.vmem [shape: bf16[16,16], index: 5, kind: input, shape index: {}]
  %s6 = inlined_call_operand.vmem [shape: f32[16,1], index: 6, kind: input, shape index: {}]
  %s7 = inlined_call_operand.vmem [shape: f32[32,128], index: 7, kind: input, shape index: {}]
  %s8 = inlined_call_operand.vmem [shape: f32[16,32], index: 8, kind: input, shape index: {}]
  %s9 = inlined_call_operand.vmem [shape: s32[3,128], index: 9, kind: input, shape index: {}]
  %s10 = inlined_call_operand.vmem [shape: f32[2,128], index: 10, kind: input, shape index: {}]
  %s11 = inlined_call_operand.vmem [shape: f32[8,128], index: 11, kind: output, shape index: {}]
  %s12 = sld [smem:[#allocation0]]
  $region62: #{_device_losses.1} parent=0
    _
  %s14 = ssub.s32 1, %s12
  %s15 = scalar_select 0, %s14, %s12
  // Predicated region
  $region2: #{_device_losses.1} parent=0 // pred_check
    _
  $region3: #{_device_losses.1} parent=0 // pred_check_branch
    %17 = sbr.rel (0) target = $region5
  $region4: #{_device_losses.1} parent=0 // pred_region
    _
  $region5: #{_device_losses.1} parent=0 // pred_fallthru
    _
  // Predicated region
  $region6: #{_device_losses.1} parent=0 // pred_check
    _
  $region7: #{_device_losses.1} parent=0 // pred_check_branch
    %19 = sbr.rel (0) target = $region9
  $region8: #{_device_losses.1} parent=0 // pred_region
    _
  $region9: #{_device_losses.1} parent=0 // pred_fallthru
    _
  // Predicated region
  $region10: #{_device_losses.1} parent=0 // pred_check
    _
  $region11: #{_device_losses.1} parent=0 // pred_check_branch
    %21 = sbr.rel (0) target = $region13
  $region12: #{_device_losses.1} parent=0 // pred_region
    _
  $region13: #{_device_losses.1} parent=0 // pred_fallthru
    _
  // Predicated region
  $region14: #{_device_losses.1} parent=0 // pred_check
    _
  $region15: #{_device_losses.1} parent=0 // pred_check_branch
    %23 = sbr.rel (0) target = $region17
  $region16: #{_device_losses.1} parent=0 // pred_region
    _
  $region17: #{_device_losses.1} parent=0 // pred_fallthru
    _
  // Predicated region
  $region18: #{_device_losses.1} parent=0 // pred_check
    _
  $region19: #{_device_losses.1} parent=0 // pred_check_branch
    %25 = sbr.rel (0) target = $region21
  $region20: #{_device_losses.1} parent=0 // pred_region
    _
  $region21: #{_device_losses.1} parent=0 // pred_fallthru
    _
  // Predicated region
  $region22: #{_device_losses.1} parent=0 // pred_check
    _
  $region23: #{_device_losses.1} parent=0 // pred_check_branch
    %27 = sbr.rel (0) target = $region25
  $region24: #{_device_losses.1} parent=0 // pred_region
    _
  $region25: #{_device_losses.1} parent=0 // pred_fallthru
    _
  // Predicated region
  $region26: #{_device_losses.1} parent=0 // pred_check
    _
  $region27: #{_device_losses.1} parent=0 // pred_check_branch
    %29 = sbr.rel (0) target = $region29
  $region28: #{_device_losses.1} parent=0 // pred_region
    _
  $region29: #{_device_losses.1} parent=0 // pred_fallthru
    _
  // Predicated region
  $region30: #{_device_losses.1} parent=0 // pred_check
    _
  $region31: #{_device_losses.1} parent=0 // pred_check_branch
    %31 = sbr.rel (0) target = $region33
  $region32: #{_device_losses.1} parent=0 // pred_region
    _
  $region33: #{_device_losses.1} parent=0 // pred_fallthru
    _
  // Predicated region
  $region34: #{_device_losses.1} parent=0 // pred_check
    _
  $region35: #{_device_losses.1} parent=0 // pred_check_branch
    %33 = sbr.rel (0) target = $region37
  $region36: #{_device_losses.1} parent=0 // pred_region
    _
  $region37: #{_device_losses.1} parent=0 // pred_fallthru
    _
  // Predicated region
  $region38: #{_device_losses.1} parent=0 // pred_check
    _
  $region39: #{_device_losses.1} parent=0 // pred_check_branch
    %35 = sbr.rel (0) target = $region41
  $region40: #{_device_losses.1} parent=0 // pred_region
    _
  $region41: #{_device_losses.1} parent=0 // pred_fallthru
    _
  // Predicated region
  $region42: #{_device_losses.1} parent=0 // pred_check
    _
  $region43: #{_device_losses.1} parent=0 // pred_check_branch
    %37 = sbr.rel (0) target = $region45
  $region44: #{_device_losses.1} parent=0 // pred_region
    _
  $region45: #{_device_losses.1} parent=0 // pred_fallthru
    _
  %v38 = vld [vmem:[%s4] sm:$0xf]
  %v39 = vld [vmem:[%s4 + $0x4] sm:$0xf]
  %v40 = vunpack.c.l.bf16 %v38
  %v41 = vunpack.c.l.bf16 %v39
  %v42 = vld [vmem:[%s5] sm:$0xf]
  %v43 = vld [vmem:[%s5 + $0x4] sm:$0xf]
  %v44 = vunpack.c.l.bf16 %v42
  %v45 = vunpack.c.l.bf16 %v43
  %v46 = vld [vmem:[%s6] sm:$0xff]
  %v47 = vld [vmem:[%s6 + $0x8] sm:$0xff]
  %v48 = vand.u32 2147483647, %v40
  %v49 = vand.u32 2147483647, %v41
  %v50 = vsub.f32 0.0, %v48
  %v51 = vsub.f32 0.0, %v49
  %v52 = vmul.f32 %v50, 1.442695
  %v53 = vpow.pop %v52
  %v54 = vmul.f32 %v51, 1.442695
  %v55 = vpow.pop %v54
  %v56 = vmax.f32 %v40, 0.0
  %v57 = vmax.f32 %v41, 0.0
  %v58 = vmul.f32 %v40, %v44
  %v59 = vmul.f32 %v41, %v45
  %v60 = vsub.f32 %v56, %v58
  %v61 = vsub.f32 %v57, %v59
  %v62 = vadd.f32 %v53, 1.0
  %v63 = vlog2.pop %v62
  %v64 = vmul.f32 %v63, 0.6931472
  %v65 = vmul.f32 -0.5, %v53
  %v66 = vadd.f32 %v65, 1.0
  %v67 = vmul.f32 %v66, %v53
  %v68 = vand.u32 2147483647, %v53
  %vm69 = vcmp.lt.f32.partialorder %v68, 0.0004427343
  %v70 = vsel %vm69, %v67, %v64
  %v71 = vadd.f32 %v55, 1.0
  %v72 = vlog2.pop %v71
  %v73 = vmul.f32 %v72, 0.6931472
  %v74 = vmul.f32 -0.5, %v55
  %v75 = vadd.f32 %v74, 1.0
  %v76 = vmul.f32 %v75, %v55
  %v77 = vand.u32 2147483647, %v55
  %vm78 = vcmp.lt.f32.partialorder %v77, 0.0004427343
  %v79 = vsel %vm78, %v76, %v73
  %v80 = vadd.f32 %v60, %v70
  %v81 = vadd.f32 %v61, %v79
  %83 = vset.pattern.permute.xlu0 0
  %84 = vperm.xlu0 %83, %v46
  %v85 = vpop.permute.xlu0 %84
  %88 = vset.pattern.permute.xlu0 0
  %89 = vperm.xlu0 %88, %v47
  %v90 = vpop.permute.xlu0 %89
  %v92 = vmul.f32 %v80, %v85
  %v93 = vmul.f32 %v81, %v90
  %vm94 = vcmask 130048
  %v95 = vsel %vm94, %v92, 0.0
  %v96 = vsel %vm94, %v93, 0.0
  %v97 = vadd.f32 %v95, %v96
  %v98 = vrot.slane %v97, 4
  %v99 = vadd.f32 %v97, %v98
  %v100 = vrot.slane %v99, 2
  %v101 = vadd.f32 %v99, %v100
  %v102 = vrot.slane %v101, 1
  %v103 = vadd.f32 %v101, %v102
  %v104 = vsel %vm94, %v103, 0.0
  %105 = vadd.xlane.f32.xlu0 %v104
  %v106 = vpop.xlane.xlu0 %105
  %v107 = vmul.f32 %v106, 0.0625
  %v108 = vadd.f32 %v53, 1.0
  %v109 = vadd.f32 %v55, 1.0
  %v110 = vrcp.pop %v108
  %v111 = vrcp.pop %v109
  %vm112 = vcmp.ge.f32.partialorder %v40, 0.0
  %vm113 = vcmp.ge.f32.partialorder %v41, 0.0
  %v114 = vmul.f32 %v53, %v110
  %v115 = vmul.f32 %v55, %v111
  %v116 = vsel %vm112, %v110, %v114
  %v117 = vsel %vm113, %v111, %v115
  %v118 = vmul.f32 %v116, %v44
  %v119 = vmul.f32 %v117, %v45
  %v120 = vsel %vm94, %v118, 0.0
  %121 = vadd.xlane.f32.xlu0 %v120
  %v122 = vpop.xlane.xlu0 %121
  %v123 = vsel %vm94, %v119, 0.0
  %124 = vadd.xlane.f32.xlu0 %v123
  %v125 = vpop.xlane.xlu0 %124
  %v126 = vmul.f32 %v122, 2.0
  %v127 = vmul.f32 %v125, 2.0
  %v128 = vadd.f32 %v116, %v44
  %v129 = vadd.f32 %v117, %v45
  %v130 = vsel %vm94, %v128, 0.0
  %131 = vadd.xlane.f32.xlu0 %v130
  %v132 = vpop.xlane.xlu0 %131
  %v133 = vsel %vm94, %v129, 0.0
  %134 = vadd.xlane.f32.xlu0 %v133
  %v135 = vpop.xlane.xlu0 %134
  %v136 = vadd.f32 %v126, 1.0
  %v137 = vadd.f32 %v127, 1.0
  %v138 = vadd.f32 %v132, 1.0
  %v139 = vadd.f32 %v135, 1.0
  %v140 = vrcp.pop %v138
  %v141 = vmul.f32 %v136, %v140
  %v142 = vrcp.pop %v139
  %v143 = vmul.f32 %v137, %v142
  %v144 = vsub.f32 1.0, %v141
  %v145 = vsub.f32 1.0, %v143
  %v146 = vmul.f32 %v144, %v46
  %v147 = vmul.f32 %v145, %v47
  %vm148 = vcmask 7168
  %v149 = vsel %vm148, %v146, 0.0
  %v150 = vsel %vm148, %v147, 0.0
  %v151 = vadd.f32 %v149, %v150
  %v152 = vrot.slane %v151, 4
  %v153 = vadd.f32 %v151, %v152
  %v154 = vrot.slane %v153, 2
  %v155 = vadd.f32 %v153, %v154
  %v156 = vrot.slane %v155, 1
  %v157 = vadd.f32 %v155, %v156
  %p158 = scmp.eq.s32.totalorder 0, 0
  // Predicated region
  $region46: #{_device_losses.1} parent=0 // pred_check
    %p159 = pneg %p158
  $region47: #{_device_losses.1} parent=0 // pred_check_branch
    %161 = sbr.rel (%p159) target = $region49
  $region48: #{_device_losses.1} parent=0 // pred_region
    %v162 = vld [vmem:[%s0] sm:$0x1f]
    %v163 = vld [vmem:[%s1] sm:$0x1]
    %v164 = vld [vmem:[%s2] sm:$0x1]
    %v165 = vld [vmem:[%s2 + $0x1] sm:$0x1]
    %vm166 = vcmask 1044480
    %v167 = vsel %vm166, %v162, -inf
    %v168 = vrot.slane %v167, 4
    %v169 = vmax.f32 %v167, %v168
    %v170 = vrot.slane %v169, 2
    %v171 = vmax.f32 %v169, %v170
    %v172 = vrot.slane %v171, 1
    %v173 = vmax.f32 %v171, %v172
    %v174 = vsub.f32 %v162, %v173
    %v175 = vmul.f32 %v174, 1.442695
    %v176 = vpow.pop %v175
    %v177 = vsel %vm166, %v176, 0.0
    %v178 = vrot.slane %v177, 4
    %v179 = vadd.f32 %v177, %v178
    %v180 = vrot.slane %v179, 2
    %v181 = vadd.f32 %v179, %v180
    %v182 = vrot.slane %v181, 1
    %v183 = vadd.f32 %v181, %v182
    %v184 = vlog2.pop %v183
    %v185 = vmul.f32 %v184, 0.6931472
    %v186 = vlaneseq
    %v187 = vshrl.u32 %v186, 7
    %v188 = vlaneseq
    %v189 = vshrl.u32 %v188, 7
    %v190 = vsub.s32 0, %v189
    %v191 = vrot.slane %v163, %v190
    %vm192 = vcmp.eq.s32.totalorder %v187, %v191
    %v193 = vsel %vm192, %v174, 0.0
    %v194 = vsel %vm166, %v193, 0.0
    %v195 = vrot.slane %v194, 4
    %v196 = vadd.f32 %v194, %v195
    %v197 = vrot.slane %v196, 2
    %v198 = vadd.f32 %v196, %v197
    %v199 = vrot.slane %v198, 1
    %v200 = vadd.f32 %v198, %v199
    %v201 = vsub.f32 %v185, %v200
    %v202 = vsub.f32 1.0, %v165
    %v203 = vmul.f32 %v164, %v202
    %v204 = vmul.f32 %v164, %v165
    %v205 = vmul.f32 %v201, %v203
    %vm206 = vcmask 1040384
    %v207 = vsel %vm206, %v205, 0.0
    %208 = vadd.xlane.f32.xlu0 %v207
    %v209 = vpop.xlane.xlu0 %208
    %v210 = vsel %vm206, %v203, 0.0
    %211 = vadd.xlane.f32.xlu0 %v210
    %v212 = vpop.xlane.xlu0 %211
    %v213 = vmax.f32 %v212, 1e-12
    %v214 = vrcp.pop %v213
    %v215 = vmul.f32 %v209, %v214
    %v216 = vmul.f32 %v201, %v204
    %v217 = vsel %vm206, %v216, 0.0
    %218 = vadd.xlane.f32.xlu0 %v217
    %v219 = vpop.xlane.xlu0 %218
    %v220 = vsel %vm206, %v204, 0.0
    %221 = vadd.xlane.f32.xlu0 %v220
    %v222 = vpop.xlane.xlu0 %221
    %v223 = vmax.f32 %v222, 1e-12
    %v224 = vrcp.pop %v223
    %v225 = vmul.f32 %v219, %v224
    %v226 = vld [vmem:[%s3] sm:$0x1]
    %v227 = vld [vmem:[%s3 + $0x1] sm:$0x1]
    %v228 = vld [vmem:[%s3 + $0x2] sm:$0x1]
    %v229 = vmax.f32 %v226, 0.0
    %v230 = vmul.f32 %v226, %v227
    %v231 = vsub.f32 %v229, %v230
    %v232 = vand.u32 2147483647, %v226
    %v233 = vsub.f32 0.0, %v232
    %v234 = vmul.f32 %v233, 1.442695
    %v235 = vpow.pop %v234
    %v236 = vadd.f32 %v235, 1.0
    %v237 = vlog2.pop %v236
    %v238 = vmul.f32 %v237, 0.6931472
    %v239 = vmul.f32 -0.5, %v235
    %v240 = vadd.f32 %v239, 1.0
    %v241 = vmul.f32 %v240, %v235
    %v242 = vand.u32 2147483647, %v235
    %vm243 = vcmp.lt.f32.partialorder %v242, 0.0004427343
    %v244 = vsel %vm243, %v241, %v238
    %v245 = vadd.f32 %v231, %v244
    %v246 = vmul.f32 %v245, %v228
    %v247 = vsel %vm206, %v246, 0.0
    %248 = vadd.xlane.f32.xlu0 %v247
    %v249 = vpop.xlane.xlu0 %248
    %v250 = vld [vmem:[%s7] sm:$0xff]
    %v251 = vld [vmem:[%s7 + $0x8] sm:$0xff]
    %v252 = vld [vmem:[%s7 + $0x10] sm:$0xff]
    %v253 = vld [vmem:[%s7 + $0x18] sm:$0xff]
    %v254 = vld [vmem:[%s8] sm:$0xff]
    %v255 = vld [vmem:[%s8 + $0x8] sm:$0xff]
    %v256 = vmul.f32 %v250, %v250
    %v257 = vmul.f32 %v251, %v251
    %v258 = vmul.f32 %v252, %v252
    %v259 = vmul.f32 %v253, %v253
    %v260 = vadd.f32 %v256, %v257
    %v261 = vadd.f32 %v260, %v258
    %v262 = vadd.f32 %v261, %v259
    %v263 = vrot.slane %v262, 4
    %v264 = vadd.f32 %v262, %v263
    %v265 = vrot.slane %v264, 2
    %v266 = vadd.f32 %v264, %v265
    %v267 = vrot.slane %v266, 1
    %v268 = vadd.f32 %v266, %v267
    %v269 = vmax.f32 %v268, 1e-24
    %v270 = vrsqrt.pop %v269
    %v271 = vmul.f32 %v250, %v270
    %v272 = vmul.f32 %v251, %v270
    %v273 = vmul.f32 %v252, %v270
    %v274 = vmul.f32 %v253, %v270
    %v275 = vmul.f32 %v254, %v254
    %v276 = vmul.f32 %v255, %v255
    %vm277 = vcmask 261120
    %v278 = vsel %vm277, %v275, 0.0
    %279 = vadd.xlane.f32.xlu0 %v278
    %v280 = vpop.xlane.xlu0 %279
    %v281 = vsel %vm277, %v276, 0.0
    %282 = vadd.xlane.f32.xlu0 %v281
    %v283 = vpop.xlane.xlu0 %282
    %v284 = vmax.f32 %v280, 1e-24
    %v285 = vmax.f32 %v283, 1e-24
    %v286 = vrsqrt.pop %v284
    %v287 = vrsqrt.pop %v285
    %v288 = vmul.f32 %v254, %v286
    %v289 = vmul.f32 %v255, %v287
    %v291 = vsel %vm277, %v288, 0
    %v294 = vsel %vm277, %v289, 0
    %296 = vmatprep.subr.mxu0 0.0
    %297 = vmatpush1.msra.mxu0 0.0
    %298 = vmatprep.subr.mxu0 0.0
    %299 = vmatpush1.msra.mxu0 0.0
    %300 = vmatprep.subr.mxu0 0.0
    %301 = vmatpush1.msra.mxu0 0.0
    %302 = vmatprep.subr.mxu0 0.0
    %303 = vmatpush1.msra.mxu0 0.0
    %304 = vmatprep.subr.mxu0 0.0
    %305 = vmatpush1.msra.mxu0 0.0
    %306 = vmatprep.subr.mxu0 0.0
    %307 = vmatpush1.msra.mxu0 0.0
    %308 = vmatprep.subr.mxu0 0.0
    %309 = vmatpush1.msra.mxu0 0.0
    %310 = vmatprep.subr.mxu0 0.0
    %311 = vmatpush1.msra.mxu0 0.0
    %312 = vmatprep.subr.mxu0 0.0
    %313 = vmatpush1.msra.mxu0 0.0
    %314 = vmatprep.subr.mxu0 0.0
    %315 = vmatpush1.msra.mxu0 0.0
    %316 = vmatprep.subr.mxu0 0.0
    %317 = vmatpush1.msra.mxu0 0.0
    %318 = vmatprep.subr.mxu0 0.0
    %319 = vmatpush1.msra.mxu0 0.0
    %320 = vmatprep.subr.mxu0 0.0
    %321 = vmatpush1.msra.mxu0 %v274
    %322 = vmatprep.subr.mxu0 0.0
    %323 = vmatpush1.msra.mxu0 %v273
    %324 = vmatprep.subr.mxu0 0.0
    %325 = vmatpush1.msra.mxu0 %v272
    %326 = vmatprep.subr.mxu0 0.0
    %327 = vmatpush1.msra.mxu0 %v271
    %328 = vmatprep.subr.mxu0 0.0
    %329 = vmatpush2.msra.mxu0 0.0
    %330 = vmatprep.subr.mxu0 0.0
    %331 = vmatpush2.msra.mxu0 0.0
    %332 = vmatprep.subr.mxu0 0.0
    %333 = vmatpush2.msra.mxu0 0.0
    %334 = vmatprep.subr.mxu0 0.0
    %335 = vmatpush2.msra.mxu0 0.0
    %336 = vmatprep.subr.mxu0 0.0
    %337 = vmatpush2.msra.mxu0 0.0
    %338 = vmatprep.subr.mxu0 0.0
    %339 = vmatpush2.msra.mxu0 0.0
    %340 = vmatprep.subr.mxu0 0.0
    %341 = vmatpush2.msra.mxu0 0.0
    %342 = vmatprep.subr.mxu0 0.0
    %343 = vmatpush2.msra.mxu0 0.0
    %344 = vmatprep.subr.mxu0 0.0
    %345 = vmatpush2.msra.mxu0 0.0
    %346 = vmatprep.subr.mxu0 0.0
    %347 = vmatpush2.msra.mxu0 0.0
    %348 = vmatprep.subr.mxu0 0.0
    %349 = vmatpush2.msra.mxu0 0.0
    %350 = vmatprep.subr.mxu0 0.0
    %351 = vmatpush2.msra.mxu0 0.0
    %352 = vmatprep.subr.mxu0 0.0
    %353 = vmatpush2.msra.mxu0 0.0
    %354 = vmatprep.subr.mxu0 0.0
    %355 = vmatpush2.msra.mxu0 0.0
    %356 = vmatprep.subr.mxu0 0.0
    %357 = vmatpush2.msra.mxu0 0.0
    %358 = vmatprep.subr.mxu0 0.0
    %359 = vmatpush2.msra.mxu0 0.0
    %360 = vmatprep.mubr.f32.mxu0 0.0
    %361 = vmatmul.mubr.f32.gmra.mxu0 %v291
    %v362 = vpop.f32.mrf.mxu0
    %v363 = vadd.f32 0.0, %v362
    %v364 = vpop.f32.mrf.mxu0
    %365 = vmatprep.mubr.f32.mxu0 0.0
    %366 = vmatmul.mubr.f32.gmra.mxu0 %v294
    %v367 = vpop.f32.mrf.mxu0
    %v368 = vadd.f32 0.0, %v367
    %v369 = vpop.f32.mrf.mxu0
    %370 = vdwg.mxu0
    %v371 = vld [vmem:[%s10 + $0x1] sm:$0x1]
    %v372 = vlaneseq
    %v373 = vshrl.u32 %v372, 7
    %v374 = vsub.s32 0, %v373
    %v375 = vrot.slane %v371, %v374
    %v376 = vmul.f32 %v363, %v375
    %v377 = vmul.f32 %v368, %v375
    %v378 = vld [vmem:[%s9] sm:$0x1]
    %v379 = vld [vmem:[%s9 + $0x1] sm:$0x1]
    %v380 = vld [vmem:[%s9 + $0x2] sm:$0x1]
    %v381 = vadd.s32 %v187, 8
    %v382 = vlaneseq
    %v383 = vshrl.u32 %v382, 7
    %v384 = vsub.s32 0, %v383
    %v385 = vrot.slane %v379, %v384
    %vm386 = vcmp.ge.s32.totalorder %v187, %v385
    %vm387 = vcmp.ge.s32.totalorder %v381, %v385
    %v388 = vlaneseq
    %v389 = vshrl.u32 %v388, 7
    %v390 = vsub.s32 0, %v389
    %v391 = vrot.slane %v380, %v390
    %vm392 = vcmp.lt.s32.totalorder %v187, %v391
    %vm393 = vcmp.lt.s32.totalorder %v381, %v391
    %vm394 = vmand %vm386, %vm392
    %vm395 = vmand %vm387, %vm393
    %v396 = vsel %vm394, %v376, -1e+30
    %v397 = vsel %vm395, %v377, -1e+30
    %v398 = vmax.f32 %v396, %v397
    %v399 = vrot.slane %v398, 4
    %v400 = vmax.f32 %v398, %v399
    %v401 = vrot.slane %v400, 2
    %v402 = vmax.f32 %v400, %v401
    %v403 = vrot.slane %v402, 1
    %v404 = vmax.f32 %v402, %v403
    %v405 = vsub.f32 %v396, %v404
    %v406 = vsub.f32 %v397, %v404
    %v407 = vmul.f32 %v405, 1.442695
    %v408 = vpow.pop %v407
    %v409 = vmul.f32 %v406, 1.442695
    %v410 = vpow.pop %v409
    %v411 = vsel %vm394, %v408, 0.0
    %v412 = vsel %vm395, %v410, 0.0
    %v413 = vadd.f32 %v411, %v412
    %v414 = vrot.slane %v413, 4
    %v415 = vadd.f32 %v413, %v414
    %v416 = vrot.slane %v415, 2
    %v417 = vadd.f32 %v415, %v416
    %v418 = vrot.slane %v417, 1
    %v419 = vadd.f32 %v417, %v418
    %v420 = vlog2.pop %v419
    %v421 = vmul.f32 %v420, 0.6931472
    %v422 = vlaneseq
    %v423 = vshrl.u32 %v422, 7
    %v424 = vsub.s32 0, %v423
    %v425 = vrot.slane %v378, %v424
    %vm426 = vcmp.eq.s32.totalorder %v187, %v425
    %vm427 = vcmp.eq.s32.totalorder %v381, %v425
    %v428 = vsel %vm426, %v405, 0.0
    %v429 = vsel %vm427, %v406, 0.0
    %v430 = vadd.f32 %v428, %v429
    %v431 = vrot.slane %v430, 4
    %v432 = vadd.f32 %v430, %v431
    %v433 = vrot.slane %v432, 2
    %v434 = vadd.f32 %v432, %v433
    %v435 = vrot.slane %v434, 1
    %v436 = vadd.f32 %v434, %v435
    %v437 = vsub.f32 %v421, %v436
    %v438 = vld [vmem:[%s10] sm:$0x1]
    %v439 = vmul.f32 %v437, %v438
    %v440 = vsel %vm206, %v439, 0.0
    %441 = vadd.xlane.f32.xlu0 %v440
    %v442 = vpop.xlane.xlu0 %441
    %v443 = vlaneseq
    %v444 = vand.u32 %v443, 127
    %vm445 = vcmp.eq.s32.totalorder %v187, 0
    %vm446 = vcmp.eq.s32.totalorder %v444, 0
    %vm447 = vmand %vm445, %vm446
    %v448 = vlaneseq
    %v449 = vshrl.u32 %v448, 7
    %v450 = vsub.s32 0, %v449
    %v451 = vrot.slane %v215, %v450
    %v452 = vsel %vm447, %v451, 0.0
    %vm453 = vcmp.eq.s32.totalorder %v444, 1
    %vm454 = vmand %vm445, %vm453
    %v455 = vlaneseq
    %v456 = vshrl.u32 %v455, 7
    %v457 = vsub.s32 0, %v456
    %v458 = vrot.slane %v225, %v457
    %v459 = vsel %vm454, %v458, 0.0
    %v460 = vadd.f32 %v452, %v459
    %vm461 = vcmp.eq.s32.totalorder %v444, 2
    %vm462 = vmand %vm445, %vm461
    %v463 = vsel %vm462, %v107, 0.0
    %v464 = vadd.f32 %v460, %v463
    %vm465 = vcmp.eq.s32.totalorder %v444, 3
    %vm466 = vmand %vm445, %vm465
    %468 = vset.pattern.permute.xlu0 0
    %469 = vperm.xlu0 %468, %v157
    %v470 = vpop.permute.xlu0 %469
    %v472 = vsel %vm466, %v470, 0.0
    %v473 = vadd.f32 %v464, %v472
    %vm474 = vcmp.eq.s32.totalorder %v444, 4
    %vm475 = vmand %vm445, %vm474
    %v476 = vlaneseq
    %v477 = vshrl.u32 %v476, 7
    %v478 = vsub.s32 0, %v477
    %v479 = vrot.slane %v249, %v478
    %v480 = vsel %vm475, %v479, 0.0
    %v481 = vadd.f32 %v473, %v480
    %vm482 = vcmp.eq.s32.totalorder %v444, 5
    %vm483 = vmand %vm445, %vm482
    %v484 = vlaneseq
    %v485 = vshrl.u32 %v484, 7
    %v486 = vsub.s32 0, %v485
    %v487 = vrot.slane %v442, %v486
    %v488 = vsel %vm483, %v487, 0.0
    %v489 = vadd.f32 %v481, %v488
    %490 = vst [vmem:[%s11] sm:$0xff] %v489
  $region49: #{_device_losses.1} parent=0 // pred_fallthru
    _
  %p491 = scmp.ne.s32.totalorder 0, 0
  // Predicated region
  $region50: #{_device_losses.1} parent=0 // pred_check
    %p492 = pneg %p491
  $region51: #{_device_losses.1} parent=0 // pred_check_branch
    %494 = sbr.rel (%p492) target = $region53
  $region52: #{_device_losses.1} parent=0 // pred_region
    %v495 = vlaneseq
    %v496 = vshrl.u32 %v495, 7
    %v497 = vlaneseq
    %v498 = vand.u32 %v497, 127
    %vm499 = vcmp.eq.s32.totalorder %v496, 0
    %vm500 = vcmp.eq.s32.totalorder %v498, 2
    %vm501 = vmand %vm499, %vm500
    %v502 = vsel %vm501, %v107, 0.0
    %v503 = vadd.f32 %v502, 0.0
    %vm504 = vcmp.eq.s32.totalorder %v498, 3
    %vm505 = vmand %vm499, %vm504
    %507 = vset.pattern.permute.xlu0 0
    %508 = vperm.xlu0 %507, %v157
    %v509 = vpop.permute.xlu0 %508
    %v511 = vsel %vm505, %v509, 0.0
    %v512 = vadd.f32 %v503, %v511
    %v513 = vadd.f32 %v512, 0.0
    %v514 = vadd.f32 %v513, 0.0
    %515 = vst [vmem:[%s11] sm:$0xff] %v514
  $region53: #{_device_losses.1} parent=0 // pred_fallthru
    _
  // Predicated region
  $region54: #{_device_losses.1} parent=0 // pred_check
    _
  $region55: #{_device_losses.1} parent=0 // pred_check_branch
    %517 = sbr.rel (0) target = $region57
  $region56: #{_device_losses.1} parent=0 // pred_region
    _
  $region57: #{_device_losses.1} parent=0 // pred_fallthru
    _
  // Predicated region
  $region58: #{_device_losses.1} parent=0 // pred_check
    _
  $region59: #{_device_losses.1} parent=0 // pred_check_branch
    %519 = sbr.rel (0) target = $region61
  $region60: #{_device_losses.1} parent=0 // pred_region
    _
  $region61: #{_device_losses.1} parent=0 // pred_fallthru
    _

</llo_original>
